<compile_context>
chip_gen: v5e
topology: v5e:2x2
jax: 0.10.0
libtpu: 0.0.40
codegen_flags: <defaults>
</compile_context>

<pallas_src>
import jax
import jax.numpy as jnp
from jax.experimental import pallas as pl
from jax.experimental.pallas import tpu as pltpu

X_DIM = 512
P_DIM = 32
NUM_CLASSES = 10
NUM_VIEWS = 3
FUSED_DIM = P_DIM * (2 + NUM_VIEWS)   # 160 = [Wk | Wv | Wq0 | Wq1 | Wq2]
OUT_PAD = 128                         # lane-dense padded classifier width


def attention_kernel(x_ref, w_all_ref, w_fc_ref, b_fc_ref, out_ref):
    # x_ref    : (1, 3, 512)  bf16   -- one batch element
    # w_all_ref: (512, 160)   bf16   -- fused [Wk | Wv | Wq0 | Wq1 | Wq2], (in, out)
    # w_fc_ref : (32, 128)    f32    -- fc weight, output cols padded 10 -> 128
    # b_fc_ref : (1, 128)     f32
    # out_ref  : (1, 1, 128)  f32
    x = x_ref[0]                                                        # (3, 512) bf16

    # One fused MXU call for all five projections (f32 accumulation).
    p = jnp.dot(x, w_all_ref[...], preferred_element_type=jnp.float32)  # (3, 160) f32

    k = p[:, 0 * P_DIM:1 * P_DIM]                                       # (3, 32)
    v = p[:, 1 * P_DIM:2 * P_DIM]                                       # (3, 32)
    # q = cat(x1,x2,x3) @ Wq == sum_i x_i @ Wq_block_i  (rows/blocks of p)
    q = (p[0:1, 2 * P_DIM:3 * P_DIM]
         + p[1:2, 3 * P_DIM:4 * P_DIM]
         + p[2:3, 4 * P_DIM:5 * P_DIM])                                 # (1, 32)

    # attention scores a_i = q . k_i  -> numerically-stable softmax (f32).
    scores = jnp.sum(q * k, axis=-1, keepdims=True)                     # (3, 1)
    m = jnp.max(scores, axis=0, keepdims=True)
    e = jnp.exp(scores - m)
    a = e / jnp.sum(e, axis=0, keepdims=True)                           # (3, 1)

    # context and classifier (lane-dense 128-wide output row).
    c = jnp.sum(a * v, axis=0, keepdims=True)                           # (1, 32)
    out_ref[0] = (jnp.dot(c, w_fc_ref[...], preferred_element_type=jnp.float32)
                  + b_fc_ref[...])                                      # (1, 128)


def _build_params(w_key, w_value, w_query, w_fc, b_fc):
    """Pure-JAX plumbing: fuse/transpose/pad weights for the kernel."""
    wq_t = w_query.T                                                    # (1536, 32)
    w_all = jnp.concatenate(
        [w_key.T, w_value.T]
        + [wq_t[i * X_DIM:(i + 1) * X_DIM, :] for i in range(NUM_VIEWS)],
        axis=1)                                                         # (512, 160)
    w_all_bf16 = w_all.astype(jnp.bfloat16)

    w_fc_pad = jnp.zeros((P_DIM, OUT_PAD), jnp.float32).at[:, :NUM_CLASSES].set(
        w_fc.T.astype(jnp.float32))                                     # (32, 128)
    b_fc_pad = jnp.zeros((1, OUT_PAD), jnp.float32).at[0, :NUM_CLASSES].set(
        b_fc.astype(jnp.float32))                                       # (1, 128)
    return w_all_bf16, w_fc_pad, b_fc_pad


def attention_forward(x, w_key, w_value, w_query, w_fc, b_fc):
    """x: (3, 512) or (B, 3, 512). Weights in PyTorch (out, in) convention."""
    single = (x.ndim == 2)
    if single:
        x = x[None]                                                     # (1, 3, 512)
    batch = x.shape[0]

    w_all, w_fc_pad, b_fc_pad = _build_params(w_key, w_value, w_query, w_fc, b_fc)
    x_bf16 = x.astype(jnp.bfloat16)

    out = pl.pallas_call(
        attention_kernel,
        out_shape=jax.ShapeDtypeStruct((batch, 1, OUT_PAD), jnp.float32),
        grid=(batch,),
        in_specs=[
            pl.BlockSpec((1, NUM_VIEWS, X_DIM), lambda b: (b, 0, 0)),   # x (per batch elt)
            pl.BlockSpec((X_DIM, FUSED_DIM), lambda b: (0, 0)),         # fused weights (resident)
            pl.BlockSpec((P_DIM, OUT_PAD), lambda b: (0, 0)),           # fc weight (resident)
            pl.BlockSpec((1, OUT_PAD), lambda b: (0, 0)),               # fc bias (resident)
        ],
        out_specs=pl.BlockSpec((1, 1, OUT_PAD), lambda b: (b, 0, 0)),
        compiler_params=pltpu.CompilerParams(
            dimension_semantics=("parallel",)),
    )(x_bf16, w_all, w_fc_pad, b_fc_pad)

    out = out[:, 0, :NUM_CLASSES]                                       # (B, 10)
    return out[0] if single else out


def attention_reference(x, w_key, w_value, w_query, w_fc, b_fc):
    """Pure-JAX reference (single (3,512) input), f32 math."""
    k = x @ w_key.T                                                     # (3, 32)
    v = x @ w_value.T                                                   # (3, 32)
    q = jnp.concatenate([x[0], x[1], x[2]]) @ w_query.T                 # (32,)
    scores = k @ q                                                      # (3,)
    a = jax.nn.softmax(scores, axis=0)
    c = a @ v                                                           # (32,)
    return c @ w_fc.T + b_fc                                            # (10,)


if __name__ == "__main__":
    key = jax.random.PRNGKey(0)
    kx, kk, kv, kq, kf, kb, kxb = jax.random.split(key, 7)

    # Deterministic synthetic parameters (PyTorch (out, in) weight layout).
    x = jax.random.normal(kx, (NUM_VIEWS, X_DIM), dtype=jnp.float32)
    w_key = jax.random.normal(kk, (P_DIM, X_DIM), dtype=jnp.float32) * (1.0 / X_DIM ** 0.5)
    w_value = jax.random.normal(kv, (P_DIM, X_DIM), dtype=jnp.float32) * (1.0 / X_DIM ** 0.5)
    w_query = jax.random.normal(kq, (P_DIM, X_DIM * NUM_VIEWS), dtype=jnp.float32) * (1.0 / (X_DIM * 3) ** 0.5)
    w_fc = jax.random.normal(kf, (NUM_CLASSES, P_DIM), dtype=jnp.float32) * (1.0 / P_DIM ** 0.5)
    b_fc = jax.random.normal(kb, (NUM_CLASSES,), dtype=jnp.float32) * 0.01

    # The kernel consumes bf16-cast x / projection weights (DMA optimization);
    # validate against an f32 reference fed the same bf16-quantized values so
    # the comparison isolates kernel correctness from the quantization itself.
    def quant(a):
        return a.astype(jnp.bfloat16).astype(jnp.float32)

    # --- single input (matches the PyTorch module's forward) ---
    out = attention_forward(x, w_key, w_value, w_query, w_fc, b_fc)
    out = jax.block_until_ready(out)
    ref = attention_reference(quant(x), quant(w_key), quant(w_value),
                              quant(w_query), w_fc, b_fc)
    assert out.shape == (NUM_CLASSES,), out.shape
    assert jnp.allclose(out, ref, atol=2e-3, rtol=2e-3), (out, ref)

    # --- batched path (grid=(B,), weights VMEM-resident across the grid) ---
    B = 4
    xb = jax.random.normal(kxb, (B, NUM_VIEWS, X_DIM), dtype=jnp.float32)
    out_b = attention_forward(xb, w_key, w_value, w_query, w_fc, b_fc)
    out_b = jax.block_until_ready(out_b)
    ref_b = jnp.stack([
        attention_reference(quant(xb[i]), quant(w_key), quant(w_value),
                            quant(w_query), w_fc, b_fc)
        for i in range(B)
    ])
    assert out_b.shape == (B, NUM_CLASSES), out_b.shape
    assert jnp.allclose(out_b, ref_b, atol=2e-3, rtol=2e-3), (out_b, ref_b)

    print("KERNEL_OK")
</pallas_src>

<mosaic_0001>
module attributes {stable_mosaic.version = 11 : i64} {
  func.func @attention_kernel(%arg0: i32, %arg1: memref<1x3x512xbf16, #tpu.memory_space<vmem>>, %arg2: memref<512x160xbf16, #tpu.memory_space<vmem>>, %arg3: memref<32x128xf32, #tpu.memory_space<vmem>>, %arg4: memref<1x128xf32, #tpu.memory_space<vmem>>, %arg5: memref<1x1x128xf32, #tpu.memory_space<vmem>>) attributes {dimension_semantics = [#tpu.dimension_semantics<parallel>], iteration_bounds = array<i64: 1>, scalar_prefetch = 0 : i64, scratch_operands = 0 : i64, tpu.core_type = #tpu.core_type<tc>, window_params = [{transform_indices = @transform_0, window_bounds = array<i64: 1, 3, 512>}, {pipeline_mode = #tpu.pipeline_mode<synchronous>, transform_indices = @transform_1, window_bounds = array<i64: 512, 160>}, {pipeline_mode = #tpu.pipeline_mode<synchronous>, transform_indices = @transform_2, window_bounds = array<i64: 32, 128>}, {pipeline_mode = #tpu.pipeline_mode<synchronous>, transform_indices = @transform_3, window_bounds = array<i64: 1, 128>}, {transform_indices = @transform_4, window_bounds = array<i64: 1, 1, 128>}]} {
    %c0 = arith.constant 0 : index
    %c0_0 = arith.constant 0 : index
    %c0_1 = arith.constant 0 : index
    %0 = vector.load %arg1[%c0, %c0_0, %c0_1] : memref<1x3x512xbf16, #tpu.memory_space<vmem>>, vector<1x3x512xbf16>
    %1 = vector.shape_cast %0 : vector<1x3x512xbf16> to vector<3x512xbf16>
    %c0_2 = arith.constant 0 : index
    %c0_3 = arith.constant 0 : index
    %2 = vector.load %arg2[%c0_2, %c0_3] : memref<512x160xbf16, #tpu.memory_space<vmem>>, vector<512x160xbf16>
    %cst = arith.constant dense<0.000000e+00> : vector<3x160xf32>
    %3 = tpu.matmul %1, %2, %cst {dimension_numbers = #tpu.dot_dimension_numbers<[1], [0], [0], [1], [0, 0, 1, 1], [], []>} : vector<3x512xbf16>, vector<512x160xbf16>, vector<3x160xf32> -> vector<3x160xf32>
    %4 = vector.extract_strided_slice %3 {offsets = [0, 0], sizes = [3, 32], strides = [1, 1]} : vector<3x160xf32> to vector<3x32xf32>
    %5 = vector.extract_strided_slice %3 {offsets = [0, 32], sizes = [3, 32], strides = [1, 1]} : vector<3x160xf32> to vector<3x32xf32>
    %6 = vector.extract_strided_slice %3 {offsets = [0, 64], sizes = [1, 32], strides = [1, 1]} : vector<3x160xf32> to vector<1x32xf32>
    %7 = vector.extract_strided_slice %3 {offsets = [1, 96], sizes = [1, 32], strides = [1, 1]} : vector<3x160xf32> to vector<1x32xf32>
    %8 = arith.addf %6, %7 : vector<1x32xf32>
    %9 = vector.extract_strided_slice %3 {offsets = [2, 128], sizes = [1, 32], strides = [1, 1]} : vector<3x160xf32> to vector<1x32xf32>
    %10 = arith.addf %8, %9 : vector<1x32xf32>
    %11 = vector.broadcast %10 : vector<1x32xf32> to vector<3x32xf32>
    %12 = arith.mulf %11, %4 : vector<3x32xf32>
    %cst_4 = arith.constant dense<0.000000e+00> : vector<3xf32>
    %13 = vector.multi_reduction <add>, %12, %cst_4 [1] : vector<3x32xf32> to vector<3xf32>
    %14 = vector.shape_cast %13 : vector<3xf32> to vector<3x1xf32>
    %cst_5 = arith.constant dense<0xFF800000> : vector<1xf32>
    %15 = vector.multi_reduction <maximumf>, %14, %cst_5 [0] : vector<3x1xf32> to vector<1xf32>
    %16 = vector.shape_cast %15 : vector<1xf32> to vector<1x1xf32>
    %17 = vector.broadcast %16 : vector<1x1xf32> to vector<3x1xf32>
    %18 = arith.subf %14, %17 : vector<3x1xf32>
    %19 = math.exp %18 : vector<3x1xf32>
    %cst_6 = arith.constant dense<0.000000e+00> : vector<1xf32>
    %20 = vector.multi_reduction <add>, %19, %cst_6 [0] : vector<3x1xf32> to vector<1xf32>
    %21 = vector.shape_cast %20 : vector<1xf32> to vector<1x1xf32>
    %22 = vector.broadcast %21 : vector<1x1xf32> to vector<3x1xf32>
    %23 = arith.divf %19, %22 : vector<3x1xf32>
    %24 = vector.broadcast %23 : vector<3x1xf32> to vector<3x32xf32>
    %25 = arith.mulf %24, %5 : vector<3x32xf32>
    %cst_7 = arith.constant dense<0.000000e+00> : vector<32xf32>
    %26 = vector.multi_reduction <add>, %25, %cst_7 [0] : vector<3x32xf32> to vector<32xf32>
    %27 = vector.shape_cast %26 : vector<32xf32> to vector<1x32xf32>
    %c0_8 = arith.constant 0 : index
    %c0_9 = arith.constant 0 : index
    %28 = vector.load %arg3[%c0_8, %c0_9] : memref<32x128xf32, #tpu.memory_space<vmem>>, vector<32x128xf32>
    %cst_10 = arith.constant dense<0.000000e+00> : vector<1x128xf32>
    %29 = tpu.matmul %27, %28, %cst_10 {dimension_numbers = #tpu.dot_dimension_numbers<[1], [0], [0], [1], [0, 0, 1, 1], [], []>} : vector<1x32xf32>, vector<32x128xf32>, vector<1x128xf32> -> vector<1x128xf32>
    %c0_11 = arith.constant 0 : index
    %c0_12 = arith.constant 0 : index
    %30 = vector.load %arg4[%c0_11, %c0_12] : memref<1x128xf32, #tpu.memory_space<vmem>>, vector<1x128xf32>
    %31 = arith.addf %29, %30 : vector<1x128xf32>
    %c0_13 = arith.constant 0 : index
    %c0_14 = arith.constant 0 : index
    %c0_15 = arith.constant 0 : index
    %32 = vector.load %arg5[%c0_13, %c0_14, %c0_15] : memref<1x1x128xf32, #tpu.memory_space<vmem>>, vector<1x1x128xf32>
    %33 = vector.shape_cast %32 : vector<1x1x128xf32> to vector<1x128xf32>
    %34 = vector.shape_cast %31 : vector<1x128xf32> to vector<1x1x128xf32>
    tpu.vector_store %arg5[%c0_13, %c0_14, %c0_15], %34 {strides = array<i32>} : memref<1x1x128xf32, #tpu.memory_space<vmem>>, vector<1x1x128xf32>,
    return
  }
  func.func @transform_0(%arg0: i32) -> (i32, i32, i32) {
    %c0_i32 = arith.constant 0 : i32
    %c0_i32_0 = arith.constant 0 : i32
    %c0_i32_1 = arith.constant 0 : i32
    return %arg0, %c0_i32, %c0_i32_0 : i32, i32, i32
  }
  func.func @transform_1(%arg0: i32) -> (i32, i32) {
    %c0_i32 = arith.constant 0 : i32
    %c0_i32_0 = arith.constant 0 : i32
    %c0_i32_1 = arith.constant 0 : i32
    return %c0_i32, %c0_i32_0 : i32, i32
  }
  func.func @transform_2(%arg0: i32) -> (i32, i32) {
    %c0_i32 = arith.constant 0 : i32
    %c0_i32_0 = arith.constant 0 : i32
    %c0_i32_1 = arith.constant 0 : i32
    return %c0_i32, %c0_i32_0 : i32, i32
  }
  func.func @transform_3(%arg0: i32) -> (i32, i32) {
    %c0_i32 = arith.constant 0 : i32
    %c0_i32_0 = arith.constant 0 : i32
    %c0_i32_1 = arith.constant 0 : i32
    return %c0_i32, %c0_i32_0 : i32, i32
  }
  func.func @transform_4(%arg0: i32) -> (i32, i32, i32) {
    %c0_i32 = arith.constant 0 : i32
    %c0_i32_0 = arith.constant 0 : i32
    %c0_i32_1 = arith.constant 0 : i32
    return %arg0, %c0_i32, %c0_i32_0 : i32, i32, i32
  }
}

</mosaic_0001>

<llo_original>
// kernel: tpu_custom_call.1
$region0: #{tpu_custom_call.1}
  #allocation0 [shape = 'u32[]', space=smem, size = 0x4, offset = 0x4, fixed_abs, tag = 'smem constant byte address 0x4 - core index']
  #allocation1 [shape = 'u32[72,128]{1,0:T(1,128)}', space=vmem, size = 0x9000, scoped, tag = 'internal scratch']
  %s0 = inlined_call_operand.vmem [shape: bf16[1,3,512], index: 0, kind: input, shape index: {}]
  %s1 = inlined_call_operand.vmem [shape: bf16[512,160], index: 1, kind: input, shape index: {}]
  %s2 = inlined_call_operand.vmem [shape: f32[32,128], index: 2, kind: input, shape index: {}]
  %s3 = inlined_call_operand.vmem [shape: f32[1,128], index: 3, kind: input, shape index: {}]
  %s4 = inlined_call_operand.hbm [shape: f32[1,1,128], index: 4, kind: output, shape index: {}]
  %s5 = sld [smem:[#allocation0]]
  $region26: #{tpu_custom_call.1} parent=0
    _
  %s7 = ssub.s32 1, %s5
  %s8 = scalar_select 0, %s7, %s5
  $region1: #{tpu_custom_call.1} parent=0
    #allocation2 [shape = 'u8[512]{0}', space=vmem, size = 0x400, scoped, tag = 'output window, operand 0, single buffered']
    #allocation3 [shape = 's32[1]{0}', space=sflag, size = 0x4, scoped, tag = 'scoped memory for tpu_custom_call.1']
    %9 = vsyncpa [#allocation3], 0
    // Predicated region
    $region2: #{tpu_custom_call.1} parent=1 // pred_check
      _
    $region3: #{tpu_custom_call.1} parent=1 // pred_check_branch
      %11 = sbr.rel (0) target = $region5
    $region4: #{tpu_custom_call.1} parent=1 // pred_region
      _
    $region5: #{tpu_custom_call.1} parent=1 // pred_fallthru
      _
    // Predicated region
    $region6: #{tpu_custom_call.1} parent=1 // pred_check
      _
    $region7: #{tpu_custom_call.1} parent=1 // pred_check_branch
      %13 = sbr.rel (0) target = $region9
    $region8: #{tpu_custom_call.1} parent=1 // pred_region
      _
    $region9: #{tpu_custom_call.1} parent=1 // pred_fallthru
      _
    // Predicated region
    $region10: #{tpu_custom_call.1} parent=1 // pred_check
      _
    $region11: #{tpu_custom_call.1} parent=1 // pred_check_branch
      %15 = sbr.rel (0) target = $region13
    $region12: #{tpu_custom_call.1} parent=1 // pred_region
      _
    $region13: #{tpu_custom_call.1} parent=1 // pred_fallthru
      _
    // Predicated region
    $region14: #{tpu_custom_call.1} parent=1 // pred_check
      _
    $region15: #{tpu_custom_call.1} parent=1 // pred_check_branch
      %17 = sbr.rel (0) target = $region17
    $region16: #{tpu_custom_call.1} parent=1 // pred_region
      _
    $region17: #{tpu_custom_call.1} parent=1 // pred_fallthru
      _
    %v18 = vld [vmem:[%s0] sm:$0xff]
    %v19 = vld [vmem:[%s1] sm:$0xff]
    %v20 = vld [vmem:[%s1 + $0x8] sm:$0xff]
    %v21 = vld [vmem:[%s1 + $0x10] sm:$0xff]
    %v22 = vld [vmem:[%s1 + $0x18] sm:$0xff]
    %v23 = vld [vmem:[%s1 + $0x20] sm:$0xff]
    %v24 = vld [vmem:[%s1 + $0x28] sm:$0xff]
    %v25 = vld [vmem:[%s1 + $0x30] sm:$0xff]
    %v26 = vld [vmem:[%s1 + $0x38] sm:$0xff]
    %v27 = vld [vmem:[%s1 + $0x40] sm:$0xff]
    %v28 = vld [vmem:[%s1 + $0x48] sm:$0xff]
    %v29 = vld [vmem:[%s1 + $0x50] sm:$0xff]
    %v30 = vld [vmem:[%s1 + $0x58] sm:$0xff]
    %v31 = vld [vmem:[%s1 + $0x60] sm:$0xff]
    %v32 = vld [vmem:[%s1 + $0x68] sm:$0xff]
    %v33 = vld [vmem:[%s1 + $0x70] sm:$0xff]
    %v34 = vld [vmem:[%s1 + $0x78] sm:$0xff]
    %v35 = vld [vmem:[%s1 + $0x80] sm:$0xff]
    %v36 = vld [vmem:[%s1 + $0x88] sm:$0xff]
    %v37 = vld [vmem:[%s1 + $0x90] sm:$0xff]
    %v38 = vld [vmem:[%s1 + $0x98] sm:$0xff]
    %v39 = vld [vmem:[%s1 + $0xa0] sm:$0xff]
    %v40 = vld [vmem:[%s1 + $0xa8] sm:$0xff]
    %v41 = vld [vmem:[%s1 + $0xb0] sm:$0xff]
    %v42 = vld [vmem:[%s1 + $0xb8] sm:$0xff]
    %v43 = vld [vmem:[%s1 + $0xc0] sm:$0xff]
    %v44 = vld [vmem:[%s1 + $0xc8] sm:$0xff]
    %v45 = vld [vmem:[%s1 + $0xd0] sm:$0xff]
    %v46 = vld [vmem:[%s1 + $0xd8] sm:$0xff]
    %v47 = vld [vmem:[%s1 + $0xe0] sm:$0xff]
    %v48 = vld [vmem:[%s1 + $0xe8] sm:$0xff]
    %v49 = vld [vmem:[%s1 + $0xf0] sm:$0xff]
    %v50 = vld [vmem:[%s1 + $0xf8] sm:$0xff]
    %v51 = vld [vmem:[%s1 + $0x100] sm:$0xff]
    %v52 = vld [vmem:[%s1 + $0x108] sm:$0xff]
    %v53 = vld [vmem:[%s1 + $0x110] sm:$0xff]
    %v54 = vld [vmem:[%s1 + $0x118] sm:$0xff]
    %v55 = vld [vmem:[%s1 + $0x120] sm:$0xff]
    %v56 = vld [vmem:[%s1 + $0x128] sm:$0xff]
    %v57 = vld [vmem:[%s1 + $0x130] sm:$0xff]
    %v58 = vld [vmem:[%s1 + $0x138] sm:$0xff]
    %v59 = vld [vmem:[%s1 + $0x140] sm:$0xff]
    %v60 = vld [vmem:[%s1 + $0x148] sm:$0xff]
    %v61 = vld [vmem:[%s1 + $0x150] sm:$0xff]
    %v62 = vld [vmem:[%s1 + $0x158] sm:$0xff]
    %v63 = vld [vmem:[%s1 + $0x160] sm:$0xff]
    %v64 = vld [vmem:[%s1 + $0x168] sm:$0xff]
    %v65 = vld [vmem:[%s1 + $0x170] sm:$0xff]
    %v66 = vld [vmem:[%s1 + $0x178] sm:$0xff]
    %v67 = vld [vmem:[%s1 + $0x180] sm:$0xff]
    %v68 = vld [vmem:[%s1 + $0x188] sm:$0xff]
    %v69 = vld [vmem:[%s1 + $0x190] sm:$0xff]
    %v70 = vld [vmem:[%s1 + $0x198] sm:$0xff]
    %v71 = vld [vmem:[%s1 + $0x1a0] sm:$0xff]
    %v72 = vld [vmem:[%s1 + $0x1a8] sm:$0xff]
    %v73 = vld [vmem:[%s1 + $0x1b0] sm:$0xff]
    %v74 = vld [vmem:[%s1 + $0x1b8] sm:$0xff]
    %v75 = vld [vmem:[%s1 + $0x1c0] sm:$0xff]
    %v76 = vld [vmem:[%s1 + $0x1c8] sm:$0xff]
    %v77 = vld [vmem:[%s1 + $0x1d0] sm:$0xff]
    %v78 = vld [vmem:[%s1 + $0x1d8] sm:$0xff]
    %v79 = vld [vmem:[%s1 + $0x1e0] sm:$0xff]
    %v80 = vld [vmem:[%s1 + $0x1e8] sm:$0xff]
    %v81 = vld [vmem:[%s1 + $0x1f0] sm:$0xff]
    %v82 = vld [vmem:[%s1 + $0x1f8] sm:$0xff]
    %84 = vst [vmem:[#allocation1] ss:$4 sm:$0xff] %v18
    %v85 = vld.sshfl [vmem:[#allocation1] sm:$0xff pattern:$0x73625140]
    %v86 = vld.sshfl [vmem:[#allocation1 + $0x8] sm:$0xff pattern:$0x73625140]
    %v87 = vld.sshfl [vmem:[#allocation1 + $0x10] sm:$0xff pattern:$0x73625140]
    %v88 = vld.sshfl [vmem:[#allocation1 + $0x18] sm:$0xff pattern:$0x73625140]
    %v157 = vunpack.c.l.b16 %v19
    %v158 = vunpack.c.h.b16 %v19
    %v159 = vunpack.c.l.b16 %v20
    %v160 = vunpack.c.h.b16 %v20
    %v161 = vunpack.c.l.b16 %v21
    %v162 = vunpack.c.h.b16 %v21
    %v163 = vunpack.c.l.b16 %v22
    %v164 = vunpack.c.h.b16 %v22
    %v165 = vunpack.c.l.b16 %v23
    %v166 = vunpack.c.h.b16 %v23
    %v167 = vunpack.c.l.b16 %v24
    %v168 = vunpack.c.h.b16 %v24
    %v169 = vunpack.c.l.b16 %v25
    %v170 = vunpack.c.h.b16 %v25
    %v171 = vunpack.c.l.b16 %v26
    %v172 = vunpack.c.h.b16 %v26
    %v173 = vunpack.c.l.b16 %v27
    %v174 = vunpack.c.h.b16 %v27
    %v175 = vunpack.c.l.b16 %v28
    %v176 = vunpack.c.h.b16 %v28
    %v177 = vunpack.c.l.b16 %v29
    %v178 = vunpack.c.h.b16 %v29
    %v179 = vunpack.c.l.b16 %v30
    %v180 = vunpack.c.h.b16 %v30
    %v181 = vunpack.c.l.b16 %v31
    %v182 = vunpack.c.h.b16 %v31
    %v183 = vunpack.c.l.b16 %v32
    %v184 = vunpack.c.h.b16 %v32
    %v185 = vunpack.c.l.b16 %v33
    %v186 = vunpack.c.h.b16 %v33
    %v187 = vunpack.c.l.b16 %v34
    %v188 = vunpack.c.h.b16 %v34
    %v189 = vunpack.c.l.b16 %v35
    %v190 = vunpack.c.h.b16 %v35
    %v191 = vunpack.c.l.b16 %v36
    %v192 = vunpack.c.h.b16 %v36
    %v193 = vunpack.c.l.b16 %v37
    %v194 = vunpack.c.h.b16 %v37
    %v195 = vunpack.c.l.b16 %v38
    %v196 = vunpack.c.h.b16 %v38
    %v197 = vunpack.c.l.b16 %v39
    %v198 = vunpack.c.h.b16 %v39
    %v199 = vunpack.c.l.b16 %v40
    %v200 = vunpack.c.h.b16 %v40
    %v201 = vunpack.c.l.b16 %v41
    %v202 = vunpack.c.h.b16 %v41
    %v203 = vunpack.c.l.b16 %v42
    %v204 = vunpack.c.h.b16 %v42
    %v205 = vunpack.c.l.b16 %v43
    %v206 = vunpack.c.h.b16 %v43
    %v207 = vunpack.c.l.b16 %v44
    %v208 = vunpack.c.h.b16 %v44
    %v209 = vunpack.c.l.b16 %v45
    %v210 = vunpack.c.h.b16 %v45
    %v211 = vunpack.c.l.b16 %v46
    %v212 = vunpack.c.h.b16 %v46
    %v213 = vunpack.c.l.b16 %v47
    %v214 = vunpack.c.h.b16 %v47
    %v215 = vunpack.c.l.b16 %v48
    %v216 = vunpack.c.h.b16 %v48
    %v217 = vunpack.c.l.b16 %v49
    %v218 = vunpack.c.h.b16 %v49
    %v219 = vunpack.c.l.b16 %v50
    %v220 = vunpack.c.h.b16 %v50
    %v221 = vunpack.c.l.b16 %v51
    %v222 = vunpack.c.h.b16 %v51
    %v223 = vunpack.c.l.b16 %v52
    %v224 = vunpack.c.h.b16 %v52
    %v225 = vunpack.c.l.b16 %v53
    %v226 = vunpack.c.h.b16 %v53
    %v227 = vunpack.c.l.b16 %v54
    %v228 = vunpack.c.h.b16 %v54
    %v229 = vunpack.c.l.b16 %v55
    %v230 = vunpack.c.h.b16 %v55
    %v231 = vunpack.c.l.b16 %v56
    %v232 = vunpack.c.h.b16 %v56
    %v233 = vunpack.c.l.b16 %v57
    %v234 = vunpack.c.h.b16 %v57
    %v235 = vunpack.c.l.b16 %v58
    %v236 = vunpack.c.h.b16 %v58
    %v237 = vunpack.c.l.b16 %v59
    %v238 = vunpack.c.h.b16 %v59
    %v239 = vunpack.c.l.b16 %v60
    %v240 = vunpack.c.h.b16 %v60
    %v241 = vunpack.c.l.b16 %v61
    %v242 = vunpack.c.h.b16 %v61
    %v243 = vunpack.c.l.b16 %v62
    %v244 = vunpack.c.h.b16 %v62
    %v245 = vunpack.c.l.b16 %v63
    %v246 = vunpack.c.h.b16 %v63
    %v247 = vunpack.c.l.b16 %v64
    %v248 = vunpack.c.h.b16 %v64
    %v249 = vunpack.c.l.b16 %v65
    %v250 = vunpack.c.h.b16 %v65
    %v251 = vunpack.c.l.b16 %v66
    %v252 = vunpack.c.h.b16 %v66
    %v253 = vunpack.c.l.b16 %v67
    %v254 = vunpack.c.h.b16 %v67
    %v255 = vunpack.c.l.b16 %v68
    %v256 = vunpack.c.h.b16 %v68
    %v257 = vunpack.c.l.b16 %v69
    %v258 = vunpack.c.h.b16 %v69
    %v259 = vunpack.c.l.b16 %v70
    %v260 = vunpack.c.h.b16 %v70
    %v261 = vunpack.c.l.b16 %v71
    %v262 = vunpack.c.h.b16 %v71
    %v263 = vunpack.c.l.b16 %v72
    %v264 = vunpack.c.h.b16 %v72
    %v265 = vunpack.c.l.b16 %v73
    %v266 = vunpack.c.h.b16 %v73
    %v267 = vunpack.c.l.b16 %v74
    %v268 = vunpack.c.h.b16 %v74
    %v269 = vunpack.c.l.b16 %v75
    %v270 = vunpack.c.h.b16 %v75
    %v271 = vunpack.c.l.b16 %v76
    %v272 = vunpack.c.h.b16 %v76
    %v273 = vunpack.c.l.b16 %v77
    %v274 = vunpack.c.h.b16 %v77
    %v275 = vunpack.c.l.b16 %v78
    %v276 = vunpack.c.h.b16 %v78
    %v277 = vunpack.c.l.b16 %v79
    %v278 = vunpack.c.h.b16 %v79
    %v279 = vunpack.c.l.b16 %v80
    %v280 = vunpack.c.h.b16 %v80
    %v281 = vunpack.c.l.b16 %v81
    %v282 = vunpack.c.h.b16 %v81
    %v283 = vunpack.c.l.b16 %v82
    %v284 = vunpack.c.h.b16 %v82
    %v285 = vpack.c.b16 %v159, %v157
    %v286 = vpack.c.b16 %v160, %v158
    %v287 = vpack.c.b16 %v163, %v161
    %v288 = vpack.c.b16 %v164, %v162
    %v289 = vpack.c.b16 %v167, %v165
    %v290 = vpack.c.b16 %v168, %v166
    %v291 = vpack.c.b16 %v171, %v169
    %v292 = vpack.c.b16 %v172, %v170
    %v293 = vpack.c.b16 %v175, %v173
    %v294 = vpack.c.b16 %v176, %v174
    %v295 = vpack.c.b16 %v179, %v177
    %v296 = vpack.c.b16 %v180, %v178
    %v297 = vpack.c.b16 %v183, %v181
    %v298 = vpack.c.b16 %v184, %v182
    %v299 = vpack.c.b16 %v187, %v185
    %v300 = vpack.c.b16 %v188, %v186
    %v301 = vpack.c.b16 %v191, %v189
    %v302 = vpack.c.b16 %v192, %v190
    %v303 = vpack.c.b16 %v195, %v193
    %v304 = vpack.c.b16 %v196, %v194
    %v305 = vpack.c.b16 %v199, %v197
    %v306 = vpack.c.b16 %v200, %v198
    %v307 = vpack.c.b16 %v203, %v201
    %v308 = vpack.c.b16 %v204, %v202
    %v309 = vpack.c.b16 %v207, %v205
    %v310 = vpack.c.b16 %v208, %v206
    %v311 = vpack.c.b16 %v211, %v209
    %v312 = vpack.c.b16 %v212, %v210
    %v313 = vpack.c.b16 %v215, %v213
    %v314 = vpack.c.b16 %v216, %v214
    %v315 = vpack.c.b16 %v219, %v217
    %v316 = vpack.c.b16 %v220, %v218
    %v317 = vpack.c.b16 %v223, %v221
    %v318 = vpack.c.b16 %v224, %v222
    %v319 = vpack.c.b16 %v227, %v225
    %v320 = vpack.c.b16 %v228, %v226
    %v321 = vpack.c.b16 %v231, %v229
    %v322 = vpack.c.b16 %v232, %v230
    %v323 = vpack.c.b16 %v235, %v233
    %v324 = vpack.c.b16 %v236, %v234
    %v325 = vpack.c.b16 %v239, %v237
    %v326 = vpack.c.b16 %v240, %v238
    %v327 = vpack.c.b16 %v243, %v241
    %v328 = vpack.c.b16 %v244, %v242
    %v329 = vpack.c.b16 %v247, %v245
    %v330 = vpack.c.b16 %v248, %v246
    %v331 = vpack.c.b16 %v251, %v249
    %v332 = vpack.c.b16 %v252, %v250
    %v333 = vpack.c.b16 %v255, %v253
    %v334 = vpack.c.b16 %v256, %v254
    %v335 = vpack.c.b16 %v259, %v257
    %v336 = vpack.c.b16 %v260, %v258
    %v337 = vpack.c.b16 %v263, %v261
    %v338 = vpack.c.b16 %v264, %v262
    %v339 = vpack.c.b16 %v267, %v265
    %v340 = vpack.c.b16 %v268, %v266
    %v341 = vpack.c.b16 %v271, %v269
    %v342 = vpack.c.b16 %v272, %v270
    %v343 = vpack.c.b16 %v275, %v273
    %v344 = vpack.c.b16 %v276, %v274
    %v345 = vpack.c.b16 %v279, %v277
    %v346 = vpack.c.b16 %v280, %v278
    %v347 = vpack.c.b16 %v283, %v281
    %v348 = vpack.c.b16 %v284, %v282
    %413 = vmatpush.bf16.msra.mxu0 %v299
    %414 = vmatpush.bf16.msra.mxu0 %v297
    %415 = vmatpush.bf16.msra.mxu0 %v295
    %416 = vmatpush.bf16.msra.mxu0 %v293
    %417 = vmatpush.bf16.msra.mxu0 %v291
    %418 = vmatpush.bf16.msra.mxu0 %v289
    %419 = vmatpush.bf16.msra.mxu0 %v287
    %420 = vmatpush.bf16.msra.mxu0 %v285
    %421 = vmatmul.bf16.gmra.mxu0 %v85
    %v422 = vpop.f32.mrf.mxu0
    %v423 = vadd.f32 0.0, %v422
    %v424 = vpop.f32.mrf.mxu0
    %425 = vdwg.mxu0
    %426 = vmatpush.bf16.msra.mxu0 %v315
    %427 = vmatpush.bf16.msra.mxu0 %v313
    %428 = vmatpush.bf16.msra.mxu0 %v311
    %429 = vmatpush.bf16.msra.mxu0 %v309
    %430 = vmatpush.bf16.msra.mxu0 %v307
    %431 = vmatpush.bf16.msra.mxu0 %v305
    %432 = vmatpush.bf16.msra.mxu0 %v303
    %433 = vmatpush.bf16.msra.mxu0 %v301
    %434 = vmatmul.bf16.gmra.mxu0 %v86
    %v435 = vpop.f32.mrf.mxu0
    %v436 = vadd.f32 %v423, %v435
    %v437 = vpop.f32.mrf.mxu0
    %438 = vdwg.mxu0
    %439 = vmatpush.bf16.msra.mxu0 %v331
    %440 = vmatpush.bf16.msra.mxu0 %v329
    %441 = vmatpush.bf16.msra.mxu0 %v327
    %442 = vmatpush.bf16.msra.mxu0 %v325
    %443 = vmatpush.bf16.msra.mxu0 %v323
    %444 = vmatpush.bf16.msra.mxu0 %v321
    %445 = vmatpush.bf16.msra.mxu0 %v319
    %446 = vmatpush.bf16.msra.mxu0 %v317
    %447 = vmatmul.bf16.gmra.mxu0 %v87
    %v448 = vpop.f32.mrf.mxu0
    %v449 = vadd.f32 %v436, %v448
    %v450 = vpop.f32.mrf.mxu0
    %451 = vdwg.mxu0
    %452 = vmatpush.bf16.msra.mxu0 %v347
    %453 = vmatpush.bf16.msra.mxu0 %v345
    %454 = vmatpush.bf16.msra.mxu0 %v343
    %455 = vmatpush.bf16.msra.mxu0 %v341
    %456 = vmatpush.bf16.msra.mxu0 %v339
    %457 = vmatpush.bf16.msra.mxu0 %v337
    %458 = vmatpush.bf16.msra.mxu0 %v335
    %459 = vmatpush.bf16.msra.mxu0 %v333
    %460 = vmatmul.bf16.gmra.mxu0 %v88
    %v461 = vpop.f32.mrf.mxu0
    %v462 = vadd.f32 %v449, %v461
    %v463 = vpop.f32.mrf.mxu0
    %464 = vdwg.mxu0
    %465 = vmatpush.bf16.msra.mxu0 %v300
    %466 = vmatpush.bf16.msra.mxu0 %v298
    %467 = vmatpush.bf16.msra.mxu0 %v296
    %468 = vmatpush.bf16.msra.mxu0 %v294
    %469 = vmatpush.bf16.msra.mxu0 %v292
    %470 = vmatpush.bf16.msra.mxu0 %v290
    %471 = vmatpush.bf16.msra.mxu0 %v288
    %472 = vmatpush.bf16.msra.mxu0 %v286
    %473 = vmatmul.bf16.gmra.mxu0 %v85
    %v474 = vpop.f32.mrf.mxu0
    %v475 = vadd.f32 0.0, %v474
    %v476 = vpop.f32.mrf.mxu0
    %477 = vdwg.mxu0
    %478 = vmatpush.bf16.msra.mxu0 %v316
    %479 = vmatpush.bf16.msra.mxu0 %v314
    %480 = vmatpush.bf16.msra.mxu0 %v312
    %481 = vmatpush.bf16.msra.mxu0 %v310
    %482 = vmatpush.bf16.msra.mxu0 %v308
    %483 = vmatpush.bf16.msra.mxu0 %v306
    %484 = vmatpush.bf16.msra.mxu0 %v304
    %485 = vmatpush.bf16.msra.mxu0 %v302
    %486 = vmatmul.bf16.gmra.mxu0 %v86
    %v487 = vpop.f32.mrf.mxu0
    %v488 = vadd.f32 %v475, %v487
    %v489 = vpop.f32.mrf.mxu0
    %490 = vdwg.mxu0
    %491 = vmatpush.bf16.msra.mxu0 %v332
    %492 = vmatpush.bf16.msra.mxu0 %v330
    %493 = vmatpush.bf16.msra.mxu0 %v328
    %494 = vmatpush.bf16.msra.mxu0 %v326
    %495 = vmatpush.bf16.msra.mxu0 %v324
    %496 = vmatpush.bf16.msra.mxu0 %v322
    %497 = vmatpush.bf16.msra.mxu0 %v320
    %498 = vmatpush.bf16.msra.mxu0 %v318
    %499 = vmatmul.bf16.gmra.mxu0 %v87
    %v500 = vpop.f32.mrf.mxu0
    %v501 = vadd.f32 %v488, %v500
    %v502 = vpop.f32.mrf.mxu0
    %503 = vdwg.mxu0
    %504 = vmatpush.bf16.msra.mxu0 %v348
    %505 = vmatpush.bf16.msra.mxu0 %v346
    %506 = vmatpush.bf16.msra.mxu0 %v344
    %507 = vmatpush.bf16.msra.mxu0 %v342
    %508 = vmatpush.bf16.msra.mxu0 %v340
    %509 = vmatpush.bf16.msra.mxu0 %v338
    %510 = vmatpush.bf16.msra.mxu0 %v336
    %511 = vmatpush.bf16.msra.mxu0 %v334
    %512 = vmatmul.bf16.gmra.mxu0 %v88
    %v513 = vpop.f32.mrf.mxu0
    %v514 = vadd.f32 %v501, %v513
    %v515 = vpop.f32.mrf.mxu0
    %516 = vdwg.mxu0
    %v518 = vrot.slane %v462, 1
    %519 = vrot.lane.b32.xlu0 %v518, 96
    %v520 = vpop.permute.xlu0 %519
    %v522 = vadd.f32 %v462, %v520
    %v524 = vrot.slane %v514, 2
    %525 = vrot.lane.b32.xlu0 %v524, 64
    %v526 = vpop.permute.xlu0 %525
    %v528 = vadd.f32 %v522, %v526
    %v529 = vperm.slane %v528, 0
    %530 = vrot.lane.b32.xlu0 %v462, 64
    %v531 = vpop.permute.xlu0 %530
    %v533 = vmul.f32 %v529, %v531
    %535 = vrot.lane.b32.xlu0 %v533, 64
    %v536 = vpop.permute.xlu0 %535
    %vm538 = vcmask 256000
    %v539 = vsel %vm538, %v536, 0.0
    %540 = vadd.xlane.f32.xlu0 %v539
    %v541 = vpop.xlane.xlu0 %540
    %vm542 = vcmask 1042432
    %v543 = vsel %vm542, %v541, -inf
    %v544 = vrot.slane %v543, 4
    %v545 = vmax.f32 %v543, %v544
    %v546 = vrot.slane %v545, 2
    %v547 = vmax.f32 %v545, %v546
    %v548 = vrot.slane %v547, 1
    %v549 = vmax.f32 %v547, %v548
    %v550 = vsub.f32 %v541, %v549
    %v551 = vmul.f32 %v550, 1.442695
    %v552 = vpow.pop %v551
    %v553 = vsel %vm542, %v552, 0.0
    %v554 = vrot.slane %v553, 4
    %v555 = vadd.f32 %v553, %v554
    %v556 = vrot.slane %v555, 2
    %v557 = vadd.f32 %v555, %v556
    %v558 = vrot.slane %v557, 1
    %v559 = vadd.f32 %v557, %v558
    %v560 = vrcp.pop %v559
    %v561 = vmul.f32 %v559, %v560
    %v562 = vsub.f32 1.0, %v561
    %v563 = vmul.f32 %v560, %v562
    %v564 = vadd.f32 %v560, %v563
    %vm565 = vweird.f32 %v559
    %vm566 = vweird.f32 %v560
    %vm567 = vmor %vm565, %vm566
    %v568 = vsel %vm567, %v560, %v564
    %v569 = vand.u32 2147483647, %v559
    %vm570 = vcmp.eq.f32.partialorder %v569, 8.507059e+37
    %v571 = vand.u32 %v559, 2147483648
    %v572 = vor.u32 1.1754944e-38, %v571
    %v573 = vsel %vm570, %v572, %v568
    %v574 = vmul.f32 %v552, %v573
    %v575 = vmul.f32 %v574, %v462
    %vm576 = vcmask 518400
    %v577 = vsel %vm576, %v575, 0.0
    %v578 = vrot.slane %v577, 4
    %v579 = vadd.f32 %v577, %v578
    %v580 = vrot.slane %v579, 2
    %v581 = vadd.f32 %v579, %v580
    %v582 = vrot.slane %v581, 1
    %v583 = vadd.f32 %v581, %v582
    %v584 = vld [vmem:[%s2] sm:$0xff]
    %v585 = vld [vmem:[%s2 + $0x8] sm:$0xff]
    %v586 = vld [vmem:[%s2 + $0x10] sm:$0xff]
    %v587 = vld [vmem:[%s2 + $0x18] sm:$0xff]
    %v588 = vld [vmem:[%s3] sm:$0x1]
    %590 = vrot.lane.b32.xlu0 %v583, 96
    %v591 = vpop.permute.xlu0 %590
    %vm592 = vcmask 261120
    %v593 = vsel %vm592, %v591, 0
    %595 = vmatpush.msra.mxu0 0.0
    %596 = vmatpush.msra.mxu0 0.0
    %597 = vmatpush.msra.mxu0 0.0
    %598 = vmatpush.msra.mxu0 0.0
    %599 = vmatpush.msra.mxu0 0.0
    %600 = vmatpush.msra.mxu0 0.0
    %601 = vmatpush.msra.mxu0 0.0
    %602 = vmatpush.msra.mxu0 0.0
    %603 = vmatpush.msra.mxu0 0.0
    %604 = vmatpush.msra.mxu0 0.0
    %605 = vmatpush.msra.mxu0 0.0
    %606 = vmatpush.msra.mxu0 0.0
    %607 = vmatpush.msra.mxu0 %v587
    %608 = vmatpush.msra.mxu0 %v586
    %609 = vmatpush.msra.mxu0 %v585
    %610 = vmatpush.msra.mxu0 %v584
    %611 = vmatmul.f32.gmra.mxu0 %v593
    %v612 = vpop.f32.mrf.mxu0
    %v613 = vadd.f32 %v588, %v612
    %614 = vdwg.mxu0
    %615 = vst [vmem:[#allocation2] sm:$0x1] %v613
    // Predicated region
    $region18: #{tpu_custom_call.1} parent=1 // pred_check
      _
    $region19: #{tpu_custom_call.1} parent=1 // pred_check_branch
      %617 = sbr.rel (0) target = $region21
    $region20: #{tpu_custom_call.1} parent=1 // pred_region
      %619 = vsyncadd [#allocation3], 0
      %s621 = sshll.u32 [#allocation2], 4
      %s622 = int_to_ptr.vmem [resolvable:$true] %s621
      %s623 = sshll.u32 %s4, 4
      %s624 = int_to_ptr.hbm [resolvable:$true] %s623
      %626 = dma.vmem_to_hbm [thread:$0]  %s622, 16, %s624, [#allocation3]
    $region21: #{tpu_custom_call.1} parent=1 // pred_fallthru
      _
    // Predicated region
    $region22: #{tpu_custom_call.1} parent=1 // pred_check
      _
    $region23: #{tpu_custom_call.1} parent=1 // pred_check_branch
      %628 = sbr.rel (0) target = $region25
    $region24: #{tpu_custom_call.1} parent=1 // pred_region
      %630 = dma.done [#allocation3], 16
    $region25: #{tpu_custom_call.1} parent=1 // pred_fallthru
      _
    %631 = vsyncpa [#allocation3], 1

</llo_original>
